<compile_context>
chip_gen: v5e
topology: v5e:2x2
jax: 0.10.0
libtpu: 0.0.40
codegen_flags: <defaults>
</compile_context>

<pallas_src>
import functools  # noqa: F401

import jax
import jax.numpy as jnp
from jax.experimental import pallas as pl
from jax.experimental.pallas import tpu as pltpu

LN_EPS = 1e-5
# > 16/32 MiB scoped defaults, < v7x 64 MiB physical.
_VMEM_LIMIT_BYTES = 48 * 1024 * 1024


# ----------------------------------------------------------------------------
# Small helpers
# ----------------------------------------------------------------------------
def _round_up(x, m):
    return ((x + m - 1) // m) * m


def _ln_f32(x, g, b):
    """LayerNorm over the last dim; x is f32, g/b broadcastable (1, D)."""
    mu = jnp.mean(x, axis=-1, keepdims=True)
    var = jnp.mean((x - mu) ** 2, axis=-1, keepdims=True)
    y = (x - mu) * jax.lax.rsqrt(var + LN_EPS)
    return y * g.astype(jnp.float32) + b.astype(jnp.float32)


# --- pl.Buffered(1) feature probe (single-buffer constant-index weights) -----
_BUFFERED_SINGLE = None


def _probe_buffered():
    if not hasattr(pl, "Buffered"):
        return False
    try:
        def k(x_ref, o_ref):
            o_ref[...] = x_ref[...] + 1.0

        x = jnp.zeros((8, 128), jnp.float32)
        out = pl.pallas_call(
            k,
            grid=(2,),
            in_specs=[pl.BlockSpec((8, 128), lambda i: (0, 0),
                                   pipeline_mode=pl.Buffered(1))],
            out_specs=pl.BlockSpec((8, 128), lambda i: (0, 0)),
            out_shape=jax.ShapeDtypeStruct((8, 128), jnp.float32),
        )(x)
        jax.block_until_ready(out)
        return True
    except Exception:  # noqa: BLE001 - fall back to default double buffering
        return False


def _single_buffered_mode():
    global _BUFFERED_SINGLE
    if _BUFFERED_SINGLE is None:
        _BUFFERED_SINGLE = _probe_buffered()
    return pl.Buffered(1) if _BUFFERED_SINGLE else None


def _const_spec(block_shape, index_map):
    """BlockSpec for operands whose block index never changes.

    Double-buffering them wastes VMEM, so request a single buffer when the
    installed jax supports pipeline_mode.
    """
    mode = _single_buffered_mode()
    if mode is None:
        return pl.BlockSpec(block_shape, index_map)
    return pl.BlockSpec(block_shape, index_map, pipeline_mode=mode)


def _pick_head_block(num_heads, head_dim, requested):
    """Heads per grid step; hb*head_dim must be lane-dense (mult of 128)."""
    def ok(hb):
        return (num_heads % hb == 0
                and ((hb * head_dim) % 128 == 0 or hb == num_heads))

    if requested is not None and ok(requested):
        return requested
    for cand in (8, 4, 2, 1):
        if cand <= num_heads and ok(cand):
            return cand
    return num_heads


def _pick_mlp_tile(inter, requested):
    if (requested is not None and inter % requested == 0
            and (requested % 128 == 0 or requested == inter)):
        return requested
    for cand in (1024, 512, 256, 128):
        if inter % cand == 0:
            return cand
    return inter


# ----------------------------------------------------------------------------
# Pallas kernels
# ----------------------------------------------------------------------------
def _patch_embed_kernel(x_ref, w_ref, o_ref):
    """o = x @ w (stride==kernel Conv2d rewritten as matmul; conv has no bias)."""
    o_ref[...] = jnp.dot(
        x_ref[...].astype(jnp.bfloat16),
        w_ref[...],                                  # already bf16
        preferred_element_type=jnp.float32,
    ).astype(o_ref.dtype)


def _embed_prelayernorm_kernel(pe_ref, cls_ref, pos_cls_ref, pos_patch_ref,
                               g_ref, b_ref, o_ref):
    """Fused: [CLS ; patch_embeds] + position_embedding -> pre_layrnorm."""
    g = g_ref[...]
    b = b_ref[...]
    cls_row = cls_ref[...].astype(jnp.float32) + pos_cls_ref[...].astype(jnp.float32)
    patch = pe_ref[0].astype(jnp.float32) + pos_patch_ref[...].astype(jnp.float32)
    y_cls = _ln_f32(cls_row, g, b)
    y_patch = _ln_f32(patch, g, b)
    o_ref[0] = jnp.concatenate([y_cls, y_patch], axis=0).astype(o_ref.dtype)


def _attn_kernel(x_ref, ln_g_ref, ln_b_ref,
                 wq_ref, bq_ref, wk_ref, bk_ref, wv_ref, bv_ref,
                 wo_ref, bo_ref,
                 o_ref, h_sc, acc_sc, *, hb, hd):
    """Self-attention half of a CLIPEncoderLayer.

    Grid = (batch, head_group).  Per step: one lane-dense projection per
    Q/K/V for the whole group (hb*hd columns), per-head softmax/context, then
    one lane-dense out-projection for the group accumulated into acc_sc.
    Residual + out-proj bias are added on the last head group.
    """
    g = pl.program_id(1)
    scale = float(hd) ** -0.5

    @pl.when(g == 0)
    def _():
        x = x_ref[0].astype(jnp.float32)
        h = _ln_f32(x, ln_g_ref[...], ln_b_ref[...])
        h_sc[...] = h.astype(jnp.bfloat16)
        acc_sc[...] = jnp.zeros_like(acc_sc)

    h = h_sc[...]                                    # (S, D) bf16
    # HF CLIP: q = (h @ Wq + bq) * scale.
    q_all = ((jnp.dot(h, wq_ref[...], preferred_element_type=jnp.float32)
              + bq_ref[...].astype(jnp.float32)) * scale).astype(jnp.bfloat16)
    k_all = (jnp.dot(h, wk_ref[...], preferred_element_type=jnp.float32)
             + bk_ref[...].astype(jnp.float32)).astype(jnp.bfloat16)
    v_all = (jnp.dot(h, wv_ref[...], preferred_element_type=jnp.float32)
             + bv_ref[...].astype(jnp.float32)).astype(jnp.bfloat16)

    ctxs = []
    for i in range(hb):                              # small, bounded unroll
        q = q_all[:, i * hd:(i + 1) * hd]
        k = k_all[:, i * hd:(i + 1) * hd]
        v = v_all[:, i * hd:(i + 1) * hd]
        s = jax.lax.dot_general(q, k, (((1,), (1,)), ((), ())),
                                preferred_element_type=jnp.float32)   # (S, S)
        s = s - jnp.max(s, axis=-1, keepdims=True)
        p = jnp.exp(s)
        p = p * pl.reciprocal(jnp.sum(p, axis=-1, keepdims=True), approx=True)
        ctxs.append(jnp.dot(p.astype(jnp.bfloat16), v,
                            preferred_element_type=jnp.float32).astype(jnp.bfloat16))
    ctx = ctxs[0] if hb == 1 else jnp.concatenate(ctxs, axis=-1)      # (S, hb*hd)
    acc_sc[...] += jnp.dot(ctx, wo_ref[...],
                           preferred_element_type=jnp.float32)        # (S, D)

    @pl.when(g == pl.num_programs(1) - 1)
    def _():
        out = (x_ref[0].astype(jnp.float32) + acc_sc[...]
               + bo_ref[...].astype(jnp.float32))
        o_ref[0] = out.astype(o_ref.dtype)


def _mlp_kernel(x_ref, ln_g_ref, ln_b_ref, w1_ref, b1_ref, w2_ref, b2_ref,
                o_ref, h_sc, acc_sc):
    """MLP half of a CLIPEncoderLayer, tiled over the intermediate dim.

    Grid = (batch, intermediate_tile).  quick_gelu is elementwise per
    intermediate unit, so the tiling is exact.
    """
    i = pl.program_id(1)

    @pl.when(i == 0)
    def _():
        x = x_ref[0].astype(jnp.float32)
        h = _ln_f32(x, ln_g_ref[...], ln_b_ref[...])
        h_sc[...] = h.astype(jnp.bfloat16)
        acc_sc[...] = x + b2_ref[...].astype(jnp.float32)   # residual + fc2 bias

    h = h_sc[...]
    t = (jnp.dot(h, w1_ref[...], preferred_element_type=jnp.float32)
         + b1_ref[...].astype(jnp.float32))
    t = t * jax.nn.sigmoid(1.702 * t)                        # quick_gelu (f32)
    acc_sc[...] += jnp.dot(t.astype(jnp.bfloat16), w2_ref[...],
                           preferred_element_type=jnp.float32)

    @pl.when(i == pl.num_programs(1) - 1)
    def _():
        o_ref[0] = acc_sc[...].astype(o_ref.dtype)


# ----------------------------------------------------------------------------
# Wrappers (glue)
# ----------------------------------------------------------------------------
def _patch_embed(patches, weight, *, block_m=256):
    """Tiled (M, Cpp) @ (Cpp, D) with Cpp padded to a multiple of 128."""
    M, K = patches.shape
    D = weight.shape[1]
    Kp = _round_up(K, 128)
    tm = _round_up(min(block_m, M), 8)
    Mp = _round_up(M, tm)
    if Mp != M or Kp != K:
        patches = jnp.pad(patches, ((0, Mp - M), (0, Kp - K)))
    if Kp != K:
        weight = jnp.pad(weight, ((0, Kp - K), (0, 0)))
    weight = weight.astype(jnp.bfloat16)
    out = pl.pallas_call(
        _patch_embed_kernel,
        grid=(Mp // tm,),
        in_specs=[pl.BlockSpec((tm, Kp), lambda m: (m, 0)),
                  _const_spec((Kp, D), lambda m: (0, 0))],
        out_specs=pl.BlockSpec((tm, D), lambda m: (m, 0)),
        out_shape=jax.ShapeDtypeStruct((Mp, D), patches.dtype),
        compiler_params=pltpu.CompilerParams(
            dimension_semantics=("parallel",),
            vmem_limit_bytes=_VMEM_LIMIT_BYTES),
    )(patches, weight)
    return out[:M]


def _embed_and_prelayernorm(patch_embeds, params):
    B, P, D = patch_embeds.shape
    S = P + 1
    cls = params["class_embedding"].reshape(1, D)
    pos = params["position_embedding"]               # (S, D)
    pos_cls, pos_patch = pos[:1], pos[1:]
    return pl.pallas_call(
        _embed_prelayernorm_kernel,
        grid=(B,),
        in_specs=[
            pl.BlockSpec((1, P, D), lambda b: (b, 0, 0)),
            _const_spec((1, D), lambda b: (0, 0)),
            _const_spec((1, D), lambda b: (0, 0)),
            _const_spec((P, D), lambda b: (0, 0)),
            _const_spec((1, D), lambda b: (0, 0)),
            _const_spec((1, D), lambda b: (0, 0)),
        ],
        out_specs=pl.BlockSpec((1, S, D), lambda b: (b, 0, 0)),
        out_shape=jax.ShapeDtypeStruct((B, S, D), patch_embeds.dtype),
        compiler_params=pltpu.CompilerParams(
            dimension_semantics=("parallel",),
            vmem_limit_bytes=_VMEM_LIMIT_BYTES),
    )(patch_embeds, cls, pos_cls, pos_patch,
      params["pre_ln_g"], params["pre_ln_b"])


def _run_attention(x, lp, num_heads, *, head_block=None):
    B, S, D = x.shape
    H = num_heads
    hd = D // H
    hb = _pick_head_block(H, hd, head_block)
    G = H // hb
    hw = hb * hd

    # bf16 weights: halves DMA traffic; accumulation stays f32 in the kernel.
    wq = lp["wq"].astype(jnp.bfloat16)
    wk = lp["wk"].astype(jnp.bfloat16)
    wv = lp["wv"].astype(jnp.bfloat16)
    wo = lp["wo"].astype(jnp.bfloat16)

    in_specs = [
        pl.BlockSpec((1, S, D), lambda b, g: (b, 0, 0)),     # x
        _const_spec((1, D), lambda b, g: (0, 0)),            # ln1 gamma
        _const_spec((1, D), lambda b, g: (0, 0)),            # ln1 beta
        pl.BlockSpec((D, hw), lambda b, g: (0, g)),          # wq column group
        pl.BlockSpec((1, hw), lambda b, g: (0, g)),          # bq
        pl.BlockSpec((D, hw), lambda b, g: (0, g)),          # wk
        pl.BlockSpec((1, hw), lambda b, g: (0, g)),          # bk
        pl.BlockSpec((D, hw), lambda b, g: (0, g)),          # wv
        pl.BlockSpec((1, hw), lambda b, g: (0, g)),          # bv
        pl.BlockSpec((hw, D), lambda b, g: (g, 0)),          # wo row group
        _const_spec((1, D), lambda b, g: (0, 0)),            # bo
    ]
    kernel = functools.partial(_attn_kernel, hb=hb, hd=hd)
    return pl.pallas_call(
        kernel,
        grid=(B, G),
        in_specs=in_specs,
        out_specs=pl.BlockSpec((1, S, D), lambda b, g: (b, 0, 0)),
        out_shape=jax.ShapeDtypeStruct((B, S, D), x.dtype),
        scratch_shapes=[pltpu.VMEM((S, D), jnp.bfloat16),    # LN(x), reused per group
                        pltpu.VMEM((S, D), jnp.float32)],    # attention accumulator
        compiler_params=pltpu.CompilerParams(
            dimension_semantics=("parallel", "arbitrary"),
            vmem_limit_bytes=_VMEM_LIMIT_BYTES),
    )(x, lp["ln1_g"], lp["ln1_b"],
      wq, lp["bq"], wk, lp["bk"], wv, lp["bv"], wo, lp["bo"])


def _run_mlp(x, lp, *, block_i=None):
    B, S, D = x.shape
    inter = lp["w1"].shape[1]
    ti = _pick_mlp_tile(inter, block_i)
    NI = inter // ti

    w1 = lp["w1"].astype(jnp.bfloat16)
    w2 = lp["w2"].astype(jnp.bfloat16)

    in_specs = [
        pl.BlockSpec((1, S, D), lambda b, i: (b, 0, 0)),     # x
        _const_spec((1, D), lambda b, i: (0, 0)),            # ln2 gamma
        _const_spec((1, D), lambda b, i: (0, 0)),            # ln2 beta
        pl.BlockSpec((D, ti), lambda b, i: (0, i)),          # fc1 weight tile
        pl.BlockSpec((1, ti), lambda b, i: (0, i)),          # fc1 bias tile
        pl.BlockSpec((ti, D), lambda b, i: (i, 0)),          # fc2 weight tile
        _const_spec((1, D), lambda b, i: (0, 0)),            # fc2 bias
    ]
    return pl.pallas_call(
        _mlp_kernel,
        grid=(B, NI),
        in_specs=in_specs,
        out_specs=pl.BlockSpec((1, S, D), lambda b, i: (b, 0, 0)),
        out_shape=jax.ShapeDtypeStruct((B, S, D), x.dtype),
        scratch_shapes=[pltpu.VMEM((S, D), jnp.bfloat16),    # LN(x)
                        pltpu.VMEM((S, D), jnp.float32)],    # output accumulator
        compiler_params=pltpu.CompilerParams(
            dimension_semantics=("parallel", "arbitrary"),
            vmem_limit_bytes=_VMEM_LIMIT_BYTES),
    )(x, lp["ln2_g"], lp["ln2_b"], w1, lp["b1"], w2, lp["b2"])


def clip_vision_tower_forward(images, params, *, select_layer=-2,
                              select_feature="patch", head_block=None,
                              mlp_block_i=None, patch_block_m=256):
    """CLIPVisionTower.forward(images) with use_q=False."""
    B, C, H, W = images.shape
    ps = params["patch_size"]
    D = params["position_embedding"].shape[-1]
    ph, pw = H // ps, W // ps
    P = ph * pw

    # ---- patch embedding: stride==kernel conv as tiled matmul ----
    # (C, ps, ps) flatten order matches Conv2d weight.reshape(D, -1).T.
    patches = (
        images.reshape(B, C, ph, ps, pw, ps)
        .transpose(0, 2, 4, 1, 3, 5)                 # (B, ph, pw, C, ps, ps)
        .reshape(B * P, C * ps * ps)
    )
    pe = _patch_embed(patches, params["patch_weight"], block_m=patch_block_m)
    pe = pe.reshape(B, P, D)

    # ---- fused [CLS ; patches] + pos-emb + pre_layrnorm ----
    hidden = _embed_and_prelayernorm(pe, params)

    # ---- encoder: only run the layers needed for hidden_states[select_layer]
    # hidden_states[j] is the input of layer j (j layers applied), so
    # select_layer=-2 skips the final layer entirely (dead compute).
    num_layers = len(params["layers"])
    layers_needed = select_layer % (num_layers + 1)
    for lp in params["layers"][:layers_needed]:
        hidden = _run_attention(hidden, lp, params["num_heads"],
                                head_block=head_block)
        hidden = _run_mlp(hidden, lp, block_i=mlp_block_i)

    feats = hidden
    if select_feature == "patch":
        feats = feats[:, 1:]                         # drop CLS token
    elif select_feature == "cls_patch":
        pass
    else:
        raise ValueError(f"Unexpected select feature: {select_feature}")
    return feats.astype(images.dtype)


# ----------------------------------------------------------------------------
# Pure-JAX reference (for correctness checking)
# ----------------------------------------------------------------------------
def _reference_forward(images, params, select_layer, select_feature):
    B, C, H, W = images.shape
    ps = params["patch_size"]
    D = params["position_embedding"].shape[-1]
    ph, pw = H // ps, W // ps
    P = ph * pw
    patches = (images.reshape(B, C, ph, ps, pw, ps)
               .transpose(0, 2, 4, 1, 3, 5).reshape(B * P, C * ps * ps))
    pe = (patches @ params["patch_weight"]).reshape(B, P, D)
    cls = jnp.broadcast_to(params["class_embedding"].reshape(1, 1, D), (B, 1, D))
    x = jnp.concatenate([cls, pe], axis=1) + params["position_embedding"][None]
    x = _ln_f32(x, params["pre_ln_g"], params["pre_ln_b"])

    Hh = params["num_heads"]
    hd = D // Hh
    num_layers = len(params["layers"])
    layers_needed = select_layer % (num_layers + 1)
    for lp in params["layers"][:layers_needed]:
        h = _ln_f32(x, lp["ln1_g"], lp["ln1_b"])
        q = (h @ lp["wq"] + lp["bq"]) * (hd ** -0.5)
        k = h @ lp["wk"] + lp["bk"]
        v = h @ lp["wv"] + lp["bv"]
        q = q.reshape(B, -1, Hh, hd).transpose(0, 2, 1, 3)
        k = k.reshape(B, -1, Hh, hd).transpose(0, 2, 1, 3)
        v = v.reshape(B, -1, Hh, hd).transpose(0, 2, 1, 3)
        s = jnp.einsum("bhqd,bhkd->bhqk", q, k)
        p = jax.nn.softmax(s, axis=-1)
        ctx = jnp.einsum("bhqk,bhkd->bhqd", p, v).transpose(0, 2, 1, 3).reshape(B, -1, D)
        x = x + ctx @ lp["wo"] + lp["bo"]
        h = _ln_f32(x, lp["ln2_g"], lp["ln2_b"])
        t = h @ lp["w1"] + lp["b1"]
        t = t * jax.nn.sigmoid(1.702 * t)
        x = x + t @ lp["w2"] + lp["b2"]

    if select_feature == "patch":
        x = x[:, 1:]
    return x.astype(images.dtype)


# ----------------------------------------------------------------------------
# Deterministic synthetic parameters (natural nn.Linear W^T layout)
# ----------------------------------------------------------------------------
def init_params(key, *, channels, patch_size, image_size, hidden, heads,
                intermediate, num_layers, dtype=jnp.float32):
    P = (image_size // patch_size) ** 2
    S = P + 1
    Cpp = channels * patch_size * patch_size
    keys = iter(jax.random.split(key, 8 + 12 * num_layers))

    def rnd(shape, scale=0.02):
        return (scale * jax.random.normal(next(keys), shape)).astype(dtype)

    params = {
        "patch_size": patch_size,
        "num_heads": heads,
        "patch_weight": rnd((Cpp, hidden)),          # Conv2d weight^T (no bias)
        "class_embedding": rnd((hidden,)),
        "position_embedding": rnd((S, hidden)),
        "pre_ln_g": jnp.ones((1, hidden), dtype),
        "pre_ln_b": jnp.zeros((1, hidden), dtype),
        "layers": [],
    }
    for _ in range(num_layers):
        lp = {
            "ln1_g": jnp.ones((1, hidden), dtype),
            "ln1_b": jnp.zeros((1, hidden), dtype),
            "wq": rnd((hidden, hidden)), "bq": rnd((1, hidden)),
            "wk": rnd((hidden, hidden)), "bk": rnd((1, hidden)),
            "wv": rnd((hidden, hidden)), "bv": rnd((1, hidden)),
            "wo": rnd((hidden, hidden)), "bo": rnd((1, hidden)),
            "ln2_g": jnp.ones((1, hidden), dtype),
            "ln2_b": jnp.zeros((1, hidden), dtype),
            "w1": rnd((hidden, intermediate)), "b1": rnd((1, intermediate)),
            "w2": rnd((intermediate, hidden)), "b2": rnd((1, hidden)),
        }
        params["layers"].append(lp)
    return params


# ----------------------------------------------------------------------------
if __name__ == "__main__":
    # Small synthetic CLIP vision config (head_dim=64 like CLIP-L).
    B, C, IMG, PS = 2, 3, 16, 4                      # -> 16 patches, 17 tokens
    HIDDEN, HEADS, INTER, LAYERS = 256, 4, 512, 3
    SELECT_LAYER, SELECT_FEATURE = -2, "patch"

    key = jax.random.PRNGKey(0)
    k_img, k_par = jax.random.split(key)
    images = jax.random.normal(k_img, (B, C, IMG, IMG), dtype=jnp.float32)
    params = init_params(
        k_par, channels=C, patch_size=PS, image_size=IMG, hidden=HIDDEN,
        heads=HEADS, intermediate=INTER, num_layers=LAYERS,
    )

    feats = clip_vision_tower_forward(
        images, params,
        select_layer=SELECT_LAYER, select_feature=SELECT_FEATURE,
        head_block=2,       # 2 heads per grid step (128-lane slab) -> 2 groups
        mlp_block_i=128,    # 4 intermediate tiles -> exercises fc1/fc2 tiling
        patch_block_m=16,   # 2 M-tiles in the patch-embed matmul
    )
    feats = jax.block_until_ready(feats)

    P = (IMG // PS) ** 2
    assert feats.shape == (B, P, HIDDEN), feats.shape
    assert feats.dtype == images.dtype
    assert bool(jnp.all(jnp.isfinite(feats)))

    # Numerical check against a pure-JAX f32 reference (bf16-matmul tolerance).
    ref = jax.block_until_ready(
        _reference_forward(images, params, SELECT_LAYER, SELECT_FEATURE))
    max_err = float(jnp.max(jnp.abs(feats - ref)))
    assert jnp.allclose(feats, ref, atol=2e-2, rtol=2e-2), max_err

    print("KERNEL_OK")
</pallas_src>

<mosaic_0001>
module attributes {stable_mosaic.version = 11 : i64} {
  func.func @k(%arg0: i32, %arg1: memref<8x128xf32, #tpu.memory_space<vmem>>, %arg2: memref<8x128xf32, #tpu.memory_space<vmem>>) attributes {dimension_semantics = [#tpu.dimension_semantics<arbitrary>], iteration_bounds = array<i64: 2>, scalar_prefetch = 0 : i64, scratch_operands = 0 : i64, tpu.core_type = #tpu.core_type<tc>, window_params = [{pipeline_mode = #tpu.pipeline_mode<synchronous>, transform_indices = @transform_0, window_bounds = array<i64: 8, 128>}, {pipeline_mode = #tpu.pipeline_mode<synchronous>, transform_indices = @transform_1, window_bounds = array<i64: 8, 128>}]} {
    %c0 = arith.constant 0 : index
    %c0_0 = arith.constant 0 : index
    %0 = vector.load %arg1[%c0, %c0_0] : memref<8x128xf32, #tpu.memory_space<vmem>>, vector<8x128xf32>
    %cst = arith.constant 1.000000e+00 : f32
    %1 = vector.broadcast %cst : f32 to vector<8x128xf32>
    %2 = arith.addf %0, %1 : vector<8x128xf32>
    %c0_1 = arith.constant 0 : index
    %c0_2 = arith.constant 0 : index
    %3 = vector.load %arg2[%c0_1, %c0_2] : memref<8x128xf32, #tpu.memory_space<vmem>>, vector<8x128xf32>
    tpu.vector_store %arg2[%c0_1, %c0_2], %2 {strides = array<i32>} : memref<8x128xf32, #tpu.memory_space<vmem>>, vector<8x128xf32>,
    return
  }
  func.func @transform_0(%arg0: i32) -> (i32, i32) {
    %c0_i32 = arith.constant 0 : i32
    %c0_i32_0 = arith.constant 0 : i32
    %c0_i32_1 = arith.constant 0 : i32
    return %c0_i32, %c0_i32_0 : i32, i32
  }
  func.func @transform_1(%arg0: i32) -> (i32, i32) {
    %c0_i32 = arith.constant 0 : i32
    %c0_i32_0 = arith.constant 0 : i32
    %c0_i32_1 = arith.constant 0 : i32
    return %c0_i32, %c0_i32_0 : i32, i32
  }
}

module attributes {stable_mosaic.version = 11 : i64} {
  func.func @_patch_embed_kernel(%arg0: i32, %arg1: memref<16x128xf32, #tpu.memory_space<vmem>>, %arg2: memref<128x256xbf16, #tpu.memory_space<vmem>>, %arg3: memref<16x256xf32, #tpu.memory_space<vmem>>) attributes {dimension_semantics = [#tpu.dimension_semantics<parallel>], iteration_bounds = array<i64: 2>, scalar_prefetch = 0 : i64, scratch_operands = 0 : i64, tpu.core_type = #tpu.core_type<tc>, window_params = [{transform_indices = @transform_0, window_bounds = array<i64: 16, 128>}, {pipeline_mode = #tpu.pipeline_mode<synchronous>, transform_indices = @transform_1, window_bounds = array<i64: 128, 256>}, {transform_indices = @transform_2, window_bounds = array<i64: 16, 256>}]} {
    %c0 = arith.constant 0 : index
    %c0_0 = arith.constant 0 : index
    %0 = vector.load %arg1[%c0, %c0_0] : memref<16x128xf32, #tpu.memory_space<vmem>>, vector<16x128xf32>
    %1 = arith.truncf %0 : vector<16x128xf32> to vector<16x128xbf16>
    %c0_1 = arith.constant 0 : index
    %c0_2 = arith.constant 0 : index
    %2 = vector.load %arg2[%c0_1, %c0_2] : memref<128x256xbf16, #tpu.memory_space<vmem>>, vector<128x256xbf16>
    %cst = arith.constant dense<0.000000e+00> : vector<16x256xf32>
    %3 = tpu.matmul %1, %2, %cst {dimension_numbers = #tpu.dot_dimension_numbers<[1], [0], [0], [1], [0, 0, 1, 1], [], []>} : vector<16x128xbf16>, vector<128x256xbf16>, vector<16x256xf32> -> vector<16x256xf32>
    %c0_3 = arith.constant 0 : index
    %c0_4 = arith.constant 0 : index
    %4 = vector.load %arg3[%c0_3, %c0_4] : memref<16x256xf32, #tpu.memory_space<vmem>>, vector<16x256xf32>
    tpu.vector_store %arg3[%c0_3, %c0_4], %3 {strides = array<i32>} : memref<16x256xf32, #tpu.memory_space<vmem>>, vector<16x256xf32>,
    return
  }
  func.func @transform_0(%arg0: i32) -> (i32, i32) {
    %c0_i32 = arith.constant 0 : i32
    %c0_i32_0 = arith.constant 0 : i32
    return %arg0, %c0_i32 : i32, i32
  }
  func.func @transform_1(%arg0: i32) -> (i32, i32) {
    %c0_i32 = arith.constant 0 : i32
    %c0_i32_0 = arith.constant 0 : i32
    %c0_i32_1 = arith.constant 0 : i32
    return %c0_i32, %c0_i32_0 : i32, i32
  }
  func.func @transform_2(%arg0: i32) -> (i32, i32) {
    %c0_i32 = arith.constant 0 : i32
    %c0_i32_0 = arith.constant 0 : i32
    return %arg0, %c0_i32 : i32, i32
  }
}

</mosaic_0001>

<llo_original>
// kernel: tpu_custom_call.1
$region0: #{tpu_custom_call.1}
  #allocation0 [shape = 'u32[]', space=smem, size = 0x4, offset = 0x4, fixed_abs, tag = 'smem constant byte address 0x4 - core index']
  #allocation1 [shape = 'u32[72,128]{1,0:T(1,128)}', space=vmem, size = 0x9000, scoped, tag = 'internal scratch']
  %s0 = inlined_call_operand.hbm [shape: f32[8,128], index: 0, kind: input, shape index: {}]
  %s1 = inlined_call_operand.hbm [shape: f32[8,128], index: 1, kind: output, shape index: {}]
  %s2 = sld [smem:[#allocation0]]
  $region41: #{tpu_custom_call.1} parent=0
    _
  %s4 = ssub.s32 1, %s2
  %s5 = scalar_select 0, %s4, %s2
  $region1: #{tpu_custom_call.1} parent=0
    #allocation2 [shape = 'u8[4096]{0}', space=vmem, size = 0x1000, scoped, tag = 'input window, operand 0, single buffered']
    #allocation3 [shape = 's32[2]{0}', space=sflag, size = 0x8, scoped, tag = 'scoped memory for tpu_custom_call.1']
    #allocation4 [shape = 's32[2]{0}', space=sflag, size = 0x8, scoped, tag = 'scoped memory for tpu_custom_call.1']
    #allocation5 [shape = 'u8[4096]{0}', space=vmem, size = 0x1000, scoped, tag = 'output window, operand 0, single buffered']
    %6 = vsyncpa [#allocation3], 0
    %7 = vsyncpa [#allocation4], 0
    loop: start=0, step=1, limit=4
    $region2: #{tpu_custom_call.1} parent=1 // loop_pre_header
      _
    $region3: #{tpu_custom_call.1} parent=1 // loop_header
      %s9 = sphi 0, %s13
      %p10 = scmp.ge.s32.totalorder %s9, 4
      %s17 = sphi 0, %s17
      %s19 = sphi 0, %s17
      %s20 = sphi 0, %s19
      %s34 = sphi 0, %s20
      %s38 = sphi 0, %s38
      %s40 = sphi 0, %s38
      %s41 = sphi 0, %s40
      %s55 = sphi 0, %s41
    $region4: #{tpu_custom_call.1} parent=1 // loop_header_branch
      %12 = sbr.rel (%p10) target = $region8
    $region5: #{tpu_custom_call.1} parent=1 // loop_body
      %s14 = ssub.s32 %s9, 1
      %s15 = ssub.s32 %s9, 2
      %s16 = sadd.s32 %s9, 1
      %s18 = sadd.s32 %s17, 1
      %p21 = scmp.eq.s32.totalorder %s9, 1
      %p22 = scmp.ne.s32.totalorder %s17, %s19
      %p23 = scmp.eq.s32.totalorder %s9, 0
      %p24 = por %p22, %p23
      %p25 = scmp.ne.s32.totalorder %s17, %s19
      %p26 = scmp.eq.s32.totalorder %s14, 1
      %p27 = por %p25, %p26
      %p28 = scmp.ne.s32.totalorder %s19, %s20
      %p29 = scmp.eq.s32.totalorder %s14, 0
      %p30 = por %p28, %p29
      %p31 = scmp.ne.s32.totalorder %s19, %s20
      %p32 = scmp.eq.s32.totalorder %s15, 1
      %p33 = por %p31, %p32
      %p35 = scmp.ne.s32.totalorder %s20, %s34
      %p36 = scmp.eq.s32.totalorder %s15, 0
      %p37 = por %p35, %p36
      %s39 = sadd.s32 %s38, 1
      %p42 = scmp.eq.s32.totalorder %s9, 1
      %p43 = scmp.ne.s32.totalorder %s38, %s40
      %p44 = scmp.eq.s32.totalorder %s9, 0
      %p45 = por %p43, %p44
      %p46 = scmp.ne.s32.totalorder %s38, %s40
      %p47 = scmp.eq.s32.totalorder %s14, 1
      %p48 = por %p46, %p47
      %p49 = scmp.ne.s32.totalorder %s40, %s41
      %p50 = scmp.eq.s32.totalorder %s14, 0
      %p51 = por %p49, %p50
      %p52 = scmp.ne.s32.totalorder %s40, %s41
      %p53 = scmp.eq.s32.totalorder %s15, 1
      %p54 = por %p52, %p53
      %p56 = scmp.ne.s32.totalorder %s41, %s55
      %p57 = scmp.eq.s32.totalorder %s15, 0
      %p58 = por %p56, %p57
      %p59 = scmp.le.s32.totalorder 1, %s9
      %p60 = scmp.lt.s32.totalorder %s9, 3
      %p61 = pnand %p59, %p60
      %p62 = pneg %p61
      // Predicated region
      $region9: #{tpu_custom_call.1} parent=5 // pred_check
        _
      $region10: #{tpu_custom_call.1} parent=5 // pred_check_branch
        %64 = sbr.rel (%p61) target = $region12
      $region11: #{tpu_custom_call.1} parent=5 // pred_region
        %s65 = ssub.s32 %s9, 1
        // Predicated region
        $region13: #{tpu_custom_call.1} parent=11 // pred_check
          %p66 = pneg %p30
        $region14: #{tpu_custom_call.1} parent=11 // pred_check_branch
          %68 = sbr.rel (%p66) target = $region16
        $region15: #{tpu_custom_call.1} parent=11 // pred_region
          %70 = vsyncadd [#allocation3], 0
          %s72 = sshll.u32 %s0, 4
          %s73 = int_to_ptr.hbm [resolvable:$true] %s72
          %s74 = sshll.u32 [#allocation2], 4
          %s75 = int_to_ptr.vmem [resolvable:$true] %s74
          %77 = dma.hbm_to_vmem [thread:$0]  %s73, 128, %s75, [#allocation3]
        $region16: #{tpu_custom_call.1} parent=11 // pred_fallthru
          _
      $region12: #{tpu_custom_call.1} parent=5 // pred_fallthru
        _
      %p78 = scmp.lt.s32.totalorder %s9, 2
      // Predicated region
      $region17: #{tpu_custom_call.1} parent=5 // pred_check
        %p79 = pneg %p78
      $region18: #{tpu_custom_call.1} parent=5 // pred_check_branch
        %81 = sbr.rel (%p79) target = $region20
      $region19: #{tpu_custom_call.1} parent=5 // pred_region
        _
      $region20: #{tpu_custom_call.1} parent=5 // pred_fallthru
        _
      %p82 = scmp.le.s32.totalorder 1, %s9
      %p83 = scmp.lt.s32.totalorder %s9, 3
      %p84 = pnand %p82, %p83
      %p85 = pneg %p84
      // Predicated region
      $region21: #{tpu_custom_call.1} parent=5 // pred_check
        _
      $region22: #{tpu_custom_call.1} parent=5 // pred_check_branch
        %87 = sbr.rel (%p84) target = $region24
      $region23: #{tpu_custom_call.1} parent=5 // pred_region
        %s88 = ssub.s32 %s9, 1
        // Predicated region
        $region25: #{tpu_custom_call.1} parent=23 // pred_check
          %p89 = pneg %p30
        $region26: #{tpu_custom_call.1} parent=23 // pred_check_branch
          %91 = sbr.rel (%p89) target = $region28
        $region27: #{tpu_custom_call.1} parent=23 // pred_region
          %93 = dma.done [#allocation3], 128
        $region28: #{tpu_custom_call.1} parent=23 // pred_fallthru
          _
        %p94 = pneg %p30
        %p95 = pneg %p27
        %p96 = pneg %p51
        %p97 = pneg %p48
        %v98 = vld [vmem:[#allocation2] sm:$0xff]
        %v99 = vadd.f32 %v98, 1.0
        %100 = vst [vmem:[#allocation5] sm:$0xff] %v99
        // Predicated region
        $region29: #{tpu_custom_call.1} parent=23 // pred_check
          %p101 = pneg %p48
        $region30: #{tpu_custom_call.1} parent=23 // pred_check_branch
          %103 = sbr.rel (%p101) target = $region32
        $region31: #{tpu_custom_call.1} parent=23 // pred_region
          %105 = vsyncadd [#allocation4], 0
          %s107 = sshll.u32 [#allocation5], 4
          %s108 = int_to_ptr.vmem [resolvable:$true] %s107
          %s109 = sshll.u32 %s1, 4
          %s110 = int_to_ptr.hbm [resolvable:$true] %s109
          %112 = dma.vmem_to_hbm [thread:$0]  %s108, 128, %s110, [#allocation4]
        $region32: #{tpu_custom_call.1} parent=23 // pred_fallthru
          _
        // Predicated region
        $region33: #{tpu_custom_call.1} parent=23 // pred_check
          %p113 = pneg %p48
        $region34: #{tpu_custom_call.1} parent=23 // pred_check_branch
          %115 = sbr.rel (%p113) target = $region36
        $region35: #{tpu_custom_call.1} parent=23 // pred_region
          %117 = dma.done [#allocation4], 128
        $region36: #{tpu_custom_call.1} parent=23 // pred_fallthru
          _
      $region24: #{tpu_custom_call.1} parent=5 // pred_fallthru
        _
      %p118 = scmp.le.s32.totalorder 2, %s9
      // Predicated region
      $region37: #{tpu_custom_call.1} parent=5 // pred_check
        %p119 = pneg %p118
      $region38: #{tpu_custom_call.1} parent=5 // pred_check_branch
        %121 = sbr.rel (%p119) target = $region40
      $region39: #{tpu_custom_call.1} parent=5 // pred_region
        %s122 = ssub.s32 %s9, 2
      $region40: #{tpu_custom_call.1} parent=5 // pred_fallthru
        _
    $region6: #{tpu_custom_call.1} parent=1 // loop_footer
      %s13 = sadd.s32 1, %s9
    $region7: #{tpu_custom_call.1} parent=1 // loop_footer_branch
      %8 = sbr.rel target = $region3
    $region8: #{tpu_custom_call.1} parent=1 // loop_exit
      _
    %123 = vsyncpa [#allocation3], 1
    %s124 = scalar_lea.sflag [#allocation3], 1
    %125 = vsyncpa %s124, 1
    %126 = vsyncpa [#allocation4], 1
    %s127 = scalar_lea.sflag [#allocation4], 1
    %128 = vsyncpa %s127, 1

// kernel: tpu_custom_call.1
$region0: #{tpu_custom_call.1}
  #allocation0 [shape = 'u32[]', space=smem, size = 0x4, offset = 0x4, fixed_abs, tag = 'smem constant byte address 0x4 - core index']
  #allocation1 [shape = 'u32[72,128]{1,0:T(1,128)}', space=vmem, size = 0x9000, scoped, tag = 'internal scratch']
  %s0 = inlined_call_operand.hbm [shape: f32[32,128], index: 0, kind: input, shape index: {}]
  %s1 = inlined_call_operand.hbm [shape: bf16[128,256], index: 1, kind: input, shape index: {}]
  %s2 = inlined_call_operand.hbm [shape: f32[32,256], index: 2, kind: output, shape index: {}]
  %s3 = sld [smem:[#allocation0]]
  $region49: #{tpu_custom_call.1} parent=0
    _
  %s5 = ssub.s32 1, %s3
  %s6 = scalar_select 0, %s5, %s3
  $region1: #{tpu_custom_call.1} parent=0
    #allocation2 [shape = 'u8[16384]{0}', space=vmem, size = 0x4000, scoped, tag = 'input window, operand 0']
    #allocation3 [shape = 's32[2]{0}', space=sflag, size = 0x8, scoped, tag = 'scoped memory for tpu_custom_call.1']
    #allocation4 [shape = 's32[2]{0}', space=sflag, size = 0x8, scoped, tag = 'scoped memory for tpu_custom_call.1']
    #allocation5 [shape = 'u8[65536]{0}', space=vmem, size = 0x10000, scoped, tag = 'input window, operand 1, single buffered']
    #allocation6 [shape = 's32[1]{0}', space=sflag, size = 0x4, scoped, tag = 'scoped memory for tpu_custom_call.1']
    #allocation7 [shape = 'u8[32768]{0}', space=vmem, size = 0x8000, scoped, tag = 'output window, operand 0']
    %7 = vsyncpa [#allocation3], 0
    %s8 = scalar_lea.sflag [#allocation3], 1
    %9 = vsyncpa %s8, 0
    %10 = vsyncpa [#allocation6], 0
    %11 = vsyncpa [#allocation4], 0
    %s12 = scalar_lea.sflag [#allocation4], 1
    %13 = vsyncpa %s12, 0
    loop: start=0, step=1, limit=4
    $region2: #{tpu_custom_call.1} parent=1 // loop_pre_header
      _
    $region3: #{tpu_custom_call.1} parent=1 // loop_header
      %s15 = sphi 0, %s19
      %p16 = scmp.ge.s32.totalorder %s15, 4
      %s25 = sphi 0, %s27
      %s28 = sphi 0, %s25
      %s29 = sphi 0, %s28
      %s45 = sphi 0, %s29
      %s49 = sphi 0, %s49
      %s51 = sphi 0, %s49
      %s52 = sphi 0, %s51
      %s66 = sphi 0, %s52
      %s72 = sphi 0, %s74
      %s75 = sphi 0, %s72
      %s76 = sphi 0, %s75
      %s92 = sphi 0, %s76
    $region4: #{tpu_custom_call.1} parent=1 // loop_header_branch
      %18 = sbr.rel (%p16) target = $region8
    $region5: #{tpu_custom_call.1} parent=1 // loop_body
      %s20 = ssub.s32 %s15, 1
      %s21 = ssub.s32 %s15, 2
      %s22 = sadd.s32 %s15, 1
      %s23 = ssub.s32 %s15, %s22
      %p24 = scmp.eq.s32.totalorder %s23, 0
      %s26 = sadd.s32 %s25, 1
      %s27 = scalar_select %p24, %s25, %s26
      %p30 = pneg %p24
      %p31 = scmp.eq.s32.totalorder %s15, 1
      %p32 = por %p30, %p31
      %p33 = scmp.ne.s32.totalorder %s25, %s28
      %p34 = scmp.eq.s32.totalorder %s15, 0
      %p35 = por %p33, %p34
      %p36 = scmp.ne.s32.totalorder %s25, %s28
      %p37 = scmp.eq.s32.totalorder %s20, 1
      %p38 = por %p36, %p37
      %p39 = scmp.ne.s32.totalorder %s28, %s29
      %p40 = scmp.eq.s32.totalorder %s20, 0
      %p41 = por %p39, %p40
      %p42 = scmp.ne.s32.totalorder %s28, %s29
      %p43 = scmp.eq.s32.totalorder %s21, 1
      %p44 = por %p42, %p43
      %p46 = scmp.ne.s32.totalorder %s29, %s45
      %p47 = scmp.eq.s32.totalorder %s21, 0
      %p48 = por %p46, %p47
      %s50 = sadd.s32 %s49, 1
      %p53 = scmp.eq.s32.totalorder %s15, 1
      %p54 = scmp.ne.s32.totalorder %s49, %s51
      %p55 = scmp.eq.s32.totalorder %s15, 0
      %p56 = por %p54, %p55
      %p57 = scmp.ne.s32.totalorder %s49, %s51
      %p58 = scmp.eq.s32.totalorder %s20, 1
      %p59 = por %p57, %p58
      %p60 = scmp.ne.s32.totalorder %s51, %s52
      %p61 = scmp.eq.s32.totalorder %s20, 0
      %p62 = por %p60, %p61
      %p63 = scmp.ne.s32.totalorder %s51, %s52
      %p64 = scmp.eq.s32.totalorder %s21, 1
      %p65 = por %p63, %p64
      %p67 = scmp.ne.s32.totalorder %s52, %s66
      %p68 = scmp.eq.s32.totalorder %s21, 0
      %p69 = por %p67, %p68
      %s70 = ssub.s32 %s15, %s22
      %p71 = scmp.eq.s32.totalorder %s70, 0
      %s73 = sadd.s32 %s72, 1
      %s74 = scalar_select %p71, %s72, %s73
      %p77 = pneg %p71
      %p78 = scmp.eq.s32.totalorder %s15, 1
      %p79 = por %p77, %p78
      %p80 = scmp.ne.s32.totalorder %s72, %s75
      %p81 = scmp.eq.s32.totalorder %s15, 0
      %p82 = por %p80, %p81
      %p83 = scmp.ne.s32.totalorder %s72, %s75
      %p84 = scmp.eq.s32.totalorder %s20, 1
      %p85 = por %p83, %p84
      %p86 = scmp.ne.s32.totalorder %s75, %s76
      %p87 = scmp.eq.s32.totalorder %s20, 0
      %p88 = por %p86, %p87
      %p89 = scmp.ne.s32.totalorder %s75, %s76
      %p90 = scmp.eq.s32.totalorder %s21, 1
      %p91 = por %p89, %p90
      %p93 = scmp.ne.s32.totalorder %s76, %s92
      %p94 = scmp.eq.s32.totalorder %s21, 0
      %p95 = por %p93, %p94
      %p96 = scmp.le.s32.totalorder 1, %s15
      %p97 = scmp.lt.s32.totalorder %s15, 3
      %p98 = pnand %p96, %p97
      %p99 = pneg %p98
      // Predicated region
      $region9: #{tpu_custom_call.1} parent=5 // pred_check
        _
      $region10: #{tpu_custom_call.1} parent=5 // pred_check_branch
        %101 = sbr.rel (%p98) target = $region12
      $region11: #{tpu_custom_call.1} parent=5 // pred_region
        %s102 = ssub.s32 %s15, 1
        // Predicated region
        $region13: #{tpu_custom_call.1} parent=11 // pred_check
          %p103 = pneg %p62
        $region14: #{tpu_custom_call.1} parent=11 // pred_check_branch
          %105 = sbr.rel (%p103) target = $region16
        $region15: #{tpu_custom_call.1} parent=11 // pred_region
          %107 = vsyncadd [#allocation6], 0
          %s108 = sshll.u32 %s1, 4
          %s109 = int_to_ptr.hbm [resolvable:$true] %s108
          %s110 = sshll.u32 [#allocation5], 4
          %s111 = int_to_ptr.vmem [resolvable:$true] %s110
          %116 = dma.hbm_to_vmem [thread:$0]  %s109, 2048, %s111, [#allocation6], 128, 128, 8
        $region16: #{tpu_custom_call.1} parent=11 // pred_fallthru
          _
      $region12: #{tpu_custom_call.1} parent=5 // pred_fallthru
        _
      %p117 = scmp.lt.s32.totalorder %s15, 2
      // Predicated region
      $region17: #{tpu_custom_call.1} parent=5 // pred_check
        %p118 = pneg %p117
      $region18: #{tpu_custom_call.1} parent=5 // pred_check_branch
        %120 = sbr.rel (%p118) target = $region20
      $region19: #{tpu_custom_call.1} parent=5 // pred_region
        // Predicated region
        $region21: #{tpu_custom_call.1} parent=19 // pred_check
          %p121 = pneg %p35
        $region22: #{tpu_custom_call.1} parent=19 // pred_check_branch
          %123 = sbr.rel (%p121) target = $region24
        $region23: #{tpu_custom_call.1} parent=19 // pred_region
          %s124 = sand.u32 %s25, 1
          %s125 = scalar_lea.sflag [#allocation3], %s124
          %s126 = sand.u32 %s25, 1
          %s127 = smul.addr %s126, 16
          %s128 = scalar_lea.vmem [#allocation2], %s127
          %s129 = smul.u32 2, %s15
          %131 = vsyncadd %s125, 0
          %s132 = smul.addr %s129, 8
          %s133 = scalar_lea.hbm %s0, %s132
          %s134 = sshll.u32 %s133, 4
          %s135 = int_to_ptr.hbm [resolvable:$true] %s134
          %s136 = sshll.u32 %s128, 4
          %s137 = int_to_ptr.vmem [resolvable:$true] %s136
          %142 = dma.hbm_to_vmem [thread:$0]  %s135, 256, %s137, %s125, 128, 128, 8
        $region24: #{tpu_custom_call.1} parent=19 // pred_fallthru
          _
      $region20: #{tpu_custom_call.1} parent=5 // pred_fallthru
        _
      %p143 = scmp.le.s32.totalorder 1, %s15
      %p144 = scmp.lt.s32.totalorder %s15, 3
      %p145 = pnand %p143, %p144
      %p146 = pneg %p145
      // Predicated region
      $region25: #{tpu_custom_call.1} parent=5 // pred_check
        _
      $region26: #{tpu_custom_call.1} parent=5 // pred_check_branch
        %148 = sbr.rel (%p145) target = $region28
      $region27: #{tpu_custom_call.1} parent=5 // pred_region
        %s149 = ssub.s32 %s15, 1
        %s150 = sand.u32 %s28, 1
        %s151 = scalar_lea.sflag [#allocation3], %s150
        %s152 = sand.u32 %s28, 1
        %s153 = smul.addr %s152, 16
        %s154 = scalar_lea.vmem [#allocation2], %s153
        // Predicated region
        $region29: #{tpu_custom_call.1} parent=27 // pred_check
          %p155 = pneg %p41
        $region30: #{tpu_custom_call.1} parent=27 // pred_check_branch
          %157 = sbr.rel (%p155) target = $region32
        $region31: #{tpu_custom_call.1} parent=27 // pred_region
          %159 = dma.done %s151, 256
        $region32: #{tpu_custom_call.1} parent=27 // pred_fallthru
          _
        // Predicated region
        $region33: #{tpu_custom_call.1} parent=27 // pred_check
          %p160 = pneg %p62
        $region34: #{tpu_custom_call.1} parent=27 // pred_check_branch
          %162 = sbr.rel (%p160) target = $region36
        $region35: #{tpu_custom_call.1} parent=27 // pred_region
          %164 = dma.done [#allocation6], 2048
        $region36: #{tpu_custom_call.1} parent=27 // pred_fallthru
          _
        %s165 = sand.u32 %s28, 1
        %s166 = scalar_lea.sflag [#allocation3], %s165
        %s167 = sand.u32 %s28, 1
        %s168 = smul.addr %s167, 16
        %s169 = scalar_lea.vmem [#allocation2], %s168
        %p170 = pneg %p41
        %p171 = pneg %p38
        %p172 = pneg %p62
        %p173 = pneg %p59
        %p174 = pneg %p88
        %p175 = pneg %p85
        %s176 = sand.u32 %s75, 1
        %s177 = scalar_lea.sflag [#allocation4], %s176
        %s178 = sand.u32 %s75, 1
        %s179 = smul.addr %s178, 32
        %s180 = scalar_lea.vmem [#allocation7], %s179
        %s181 = smul.u32 2, %s20
        %s182 = smul.u32 2, %s20
        %v183 = vld [vmem:[%s154] sm:$0xff]
        %v184 = vld [vmem:[%s154 + $0x8] sm:$0xff]
        %v185 = vpack.c.bf16 %v184, %v183
        %v186 = vld [vmem:[#allocation5] sm:$0xff]
        %v187 = vld [vmem:[#allocation5 + $0x8] sm:$0xff]
        %v188 = vld [vmem:[#allocation5 + $0x10] sm:$0xff]
        %v189 = vld [vmem:[#allocation5 + $0x18] sm:$0xff]
        %v190 = vld [vmem:[#allocation5 + $0x20] sm:$0xff]
        %v191 = vld [vmem:[#allocation5 + $0x28] sm:$0xff]
        %v192 = vld [vmem:[#allocation5 + $0x30] sm:$0xff]
        %v193 = vld [vmem:[#allocation5 + $0x38] sm:$0xff]
        %v194 = vld [vmem:[#allocation5 + $0x40] sm:$0xff]
        %v195 = vld [vmem:[#allocation5 + $0x48] sm:$0xff]
        %v196 = vld [vmem:[#allocation5 + $0x50] sm:$0xff]
        %v197 = vld [vmem:[#allocation5 + $0x58] sm:$0xff]
        %v198 = vld [vmem:[#allocation5 + $0x60] sm:$0xff]
        %v199 = vld [vmem:[#allocation5 + $0x68] sm:$0xff]
        %v200 = vld [vmem:[#allocation5 + $0x70] sm:$0xff]
        %v201 = vld [vmem:[#allocation5 + $0x78] sm:$0xff]
        %v218 = vunpack.c.l.b16 %v186
        %v219 = vunpack.c.h.b16 %v186
        %v220 = vunpack.c.l.b16 %v187
        %v221 = vunpack.c.h.b16 %v187
        %v222 = vunpack.c.l.b16 %v188
        %v223 = vunpack.c.h.b16 %v188
        %v224 = vunpack.c.l.b16 %v189
        %v225 = vunpack.c.h.b16 %v189
        %v226 = vunpack.c.l.b16 %v190
        %v227 = vunpack.c.h.b16 %v190
        %v228 = vunpack.c.l.b16 %v191
        %v229 = vunpack.c.h.b16 %v191
        %v230 = vunpack.c.l.b16 %v192
        %v231 = vunpack.c.h.b16 %v192
        %v232 = vunpack.c.l.b16 %v193
        %v233 = vunpack.c.h.b16 %v193
        %v234 = vunpack.c.l.b16 %v194
        %v235 = vunpack.c.h.b16 %v194
        %v236 = vunpack.c.l.b16 %v195
        %v237 = vunpack.c.h.b16 %v195
        %v238 = vunpack.c.l.b16 %v196
        %v239 = vunpack.c.h.b16 %v196
        %v240 = vunpack.c.l.b16 %v197
        %v241 = vunpack.c.h.b16 %v197
        %v242 = vunpack.c.l.b16 %v198
        %v243 = vunpack.c.h.b16 %v198
        %v244 = vunpack.c.l.b16 %v199
        %v245 = vunpack.c.h.b16 %v199
        %v246 = vunpack.c.l.b16 %v200
        %v247 = vunpack.c.h.b16 %v200
        %v248 = vunpack.c.l.b16 %v201
        %v249 = vunpack.c.h.b16 %v201
        %v250 = vpack.c.b16 %v220, %v218
        %v251 = vpack.c.b16 %v221, %v219
        %v252 = vpack.c.b16 %v224, %v222
        %v253 = vpack.c.b16 %v225, %v223
        %v254 = vpack.c.b16 %v228, %v226
        %v255 = vpack.c.b16 %v229, %v227
        %v256 = vpack.c.b16 %v232, %v230
        %v257 = vpack.c.b16 %v233, %v231
        %v258 = vpack.c.b16 %v236, %v234
        %v259 = vpack.c.b16 %v237, %v235
        %v260 = vpack.c.b16 %v240, %v238
        %v261 = vpack.c.b16 %v241, %v239
        %v262 = vpack.c.b16 %v244, %v242
        %v263 = vpack.c.b16 %v245, %v243
        %v264 = vpack.c.b16 %v248, %v246
        %v265 = vpack.c.b16 %v249, %v247
        %282 = vmatpush.bf16.msra.mxu0 %v264
        %283 = vmatpush.bf16.msra.mxu0 %v262
        %284 = vmatpush.bf16.msra.mxu0 %v260
        %285 = vmatpush.bf16.msra.mxu0 %v258
        %286 = vmatpush.bf16.msra.mxu0 %v256
        %287 = vmatpush.bf16.msra.mxu0 %v254
        %288 = vmatpush.bf16.msra.mxu0 %v252
        %289 = vmatpush.bf16.msra.mxu0 %v250
        %290 = vmatmul.bf16.gmra.mxu0 %v185
        %v291 = vpop.f32.mrf.mxu0
        %v292 = vadd.f32 0.0, %v291
        %v293 = vpop.f32.mrf.mxu0
        %v294 = vadd.f32 0.0, %v293
        %295 = vdwg.mxu0
        %296 = vmatpush.bf16.msra.mxu0 %v265
        %297 = vmatpush.bf16.msra.mxu0 %v263
        %298 = vmatpush.bf16.msra.mxu0 %v261
        %299 = vmatpush.bf16.msra.mxu0 %v259
        %300 = vmatpush.bf16.msra.mxu0 %v257
        %301 = vmatpush.bf16.msra.mxu0 %v255
        %302 = vmatpush.bf16.msra.mxu0 %v253
        %303 = vmatpush.bf16.msra.mxu0 %v251
        %304 = vmatmul.bf16.gmra.mxu0 %v185
        %v305 = vpop.f32.mrf.mxu0
        %v306 = vadd.f32 0.0, %v305
        %v307 = vpop.f32.mrf.mxu0
        %v308 = vadd.f32 0.0, %v307
        %309 = vdwg.mxu0
        %310 = vst [vmem:[%s180] sm:$0xff] %v292
        %311 = vst [vmem:[%s180 + $0x8] sm:$0xff] %v306
        %312 = vst [vmem:[%s180 + $0x10] sm:$0xff] %v294
        %313 = vst [vmem:[%s180 + $0x18] sm:$0xff] %v308
        %s314 = sand.u32 %s75, 1
        %s315 = scalar_lea.sflag [#allocation4], %s314
        %s316 = sand.u32 %s75, 1
        %s317 = smul.addr %s316, 32
        %s318 = scalar_lea.vmem [#allocation7], %s317
        // Predicated region
        $region37: #{tpu_custom_call.1} parent=27 // pred_check
          %p319 = pneg %p85
        $region38: #{tpu_custom_call.1} parent=27 // pred_check_branch
          %321 = sbr.rel (%p319) target = $region40
        $region39: #{tpu_custom_call.1} parent=27 // pred_region
          %s322 = smul.u32 2, %s20
          %324 = vsyncadd %s315, 0
          %s325 = smul.addr %s322, 2
          %s326 = smul.addr %s325, 8
          %s327 = scalar_lea.hbm %s2, %s326
          %s328 = sshll.u32 %s318, 4
          %s329 = int_to_ptr.vmem [resolvable:$true] %s328
          %s330 = sshll.u32 %s327, 4
          %s331 = int_to_ptr.hbm [resolvable:$true] %s330
          %336 = dma.vmem_to_hbm [thread:$0]  %s329, 512, %s331, %s315, 256, 256, 16
        $region40: #{tpu_custom_call.1} parent=27 // pred_fallthru
          _
      $region28: #{tpu_custom_call.1} parent=5 // pred_fallthru
        _
      %p337 = scmp.le.s32.totalorder 2, %s15
      // Predicated region
      $region41: #{tpu_custom_call.1} parent=5 // pred_check
        %p338 = pneg %p337
      $region42: #{tpu_custom_call.1} parent=5 // pred_check_branch
        %340 = sbr.rel (%p338) target = $region44
      $region43: #{tpu_custom_call.1} parent=5 // pred_region
        %s341 = ssub.s32 %s15, 2
        // Predicated region
        $region45: #{tpu_custom_call.1} parent=43 // pred_check
          %p342 = pneg %p91
        $region46: #{tpu_custom_call.1} parent=43 // pred_check_branch
          %344 = sbr.rel (%p342) target = $region48
        $region47: #{tpu_custom_call.1} parent=43 // pred_region
          %s345 = sand.u32 %s76, 1
          %s346 = scalar_lea.sflag [#allocation4], %s345
          %s347 = sand.u32 %s76, 1
          %s348 = smul.addr %s347, 32
          %s349 = scalar_lea.vmem [#allocation7], %s348
          %351 = dma.done %s346, 512
        $region48: #{tpu_custom_call.1} parent=43 // pred_fallthru
          _
      $region44: #{tpu_custom_call.1} parent=5 // pred_fallthru
        _
    $region6: #{tpu_custom_call.1} parent=1 // loop_footer
      %s19 = sadd.s32 1, %s15
    $region7: #{tpu_custom_call.1} parent=1 // loop_footer_branch
      %14 = sbr.rel target = $region3
    $region8: #{tpu_custom_call.1} parent=1 // loop_exit
      _
    %352 = vsyncpa [#allocation3], 1
    %s353 = scalar_lea.sflag [#allocation3], 1
    %354 = vsyncpa %s353, 1
    %355 = vsyncpa [#allocation6], 1
    %356 = vsyncpa [#allocation4], 1
    %s357 = scalar_lea.sflag [#allocation4], 1
    %358 = vsyncpa %s357, 1

</llo_original>
